<compile_context>
chip_gen: v7x
topology: tpu7x:2x2x1
jax: 0.10.0
libtpu: 0.0.40
codegen_flags: <defaults>
</compile_context>

<pallas_src>
import jax
import jax.numpy as jnp
import numpy as np
from jax.experimental import pallas as pl
from jax.experimental.pallas import tpu as pltpu

NEG_SLOPE = 0.01  # nn.LeakyReLU() default negative_slope


def _leaky(y):
    return jnp.where(y >= 0, y, NEG_SLOPE * y)


# ---------------------------------------------------------------------------
# Fused kernel factory: full CNN forward for one batch sample per grid step.
# ---------------------------------------------------------------------------
def _make_cnn_kernel(conv_meta, n_lin):
    """conv_meta: tuple of (K, stride, Lout, Cin, Cout) per conv layer."""
    n_conv = len(conv_meta)
    n_in = 1 + 2 * n_conv + 2 * n_lin

    def kernel(*refs):
        x_ref = refs[0]                        # (Lin, 1)  channel-last input
        conv_refs = refs[1:1 + 2 * n_conv]     # (w, b) per conv layer
        lin_refs = refs[1 + 2 * n_conv:n_in]   # (w_t, b_col) per linear layer
        o_ref = refs[n_in]                     # (out_dim, C_last)
        scratch = refs[n_in + 1:]              # VMEM buffers for conv intermediates

        # ---- conv stack: y[l, d] = LeakyReLU(b[d] + sum_k x[l*s + k, :] @ w[k, :, d])
        cur = x_ref
        y = None
        for i, (K, s, lout, cin, cout) in enumerate(conv_meta):
            w_ref = conv_refs[2 * i]           # (K, Cin, Cout)
            b_ref = conv_refs[2 * i + 1]       # (1, Cout)
            acc = None
            for k in range(K):                 # static unroll; K is small
                sl = pl.ds(k, lout) if s == 1 else pl.ds(k, lout, stride=s)
                xk = cur[sl, :]                # (Lout, Cin) strided slice, stays in VMEM
                wk = w_ref[k]                  # (Cin, Cout)
                if cin == 1:                   # degenerate contraction -> broadcast product
                    t = xk * wk
                else:
                    t = jnp.dot(xk, wk, preferred_element_type=jnp.float32)
                acc = t if acc is None else acc + t
            y = _leaky(acc + b_ref[...])
            if i + 1 < n_conv:                 # hand off to the next conv via VMEM scratch
                scratch[i][...] = y
                cur = scratch[i]

        # ---- linear stack over the length axis, per conv channel (PyTorch semantics).
        # Keep h as (features, C): h <- W_torch @ h + b, so no transposes are required.
        h = y                                  # (L_last, C_last)
        for j in range(n_lin):
            wt_ref = lin_refs[2 * j]           # (out_f, in_f) == torch Linear.weight layout
            bc_ref = lin_refs[2 * j + 1]       # (out_f, 1)
            h = jnp.dot(wt_ref[...], h, preferred_element_type=jnp.float32) + bc_ref[...]
            if j < n_lin - 1:                  # no activation after the last Linear
                h = _leaky(h)
        o_ref[...] = h.astype(o_ref.dtype)

    return kernel


# ---------------------------------------------------------------------------
# Wrapper: builds specs and runs the single fused pallas_call.
# ---------------------------------------------------------------------------
def cnn_forward(x, params, strides):
    if x.ndim == 3:                            # already (B, 1, L) like torch NCW input
        x = jnp.squeeze(x, axis=1)
    B, Lin = x.shape
    x_cl = x.astype(jnp.float32)[:, :, None]   # (B, Lin, 1) channel-last

    inputs = [x_cl]
    in_specs = [pl.BlockSpec((None, Lin, 1), lambda i: (i, 0, 0))]

    conv_meta = []
    L, cin = Lin, 1
    for (w, b), s in zip(params["conv"], strides):
        cout, _, K = w.shape
        lout = (L - K) // s + 1
        conv_meta.append((K, s, lout, cin, cout))
        inputs += [jnp.transpose(w, (2, 1, 0)),          # (K, Cin, Cout)
                   b.reshape(1, cout)]
        in_specs += [pl.BlockSpec((K, cin, cout), lambda i: (0, 0, 0)),
                     pl.BlockSpec((1, cout), lambda i: (0, 0))]
        L, cin = lout, cout
    L_last, C_last = L, cin

    n_lin = len(params["lin"])
    for (w, b) in params["lin"]:
        fan_in, fan_out = w.shape
        inputs += [w.T,                                  # (out_f, in_f) torch layout
                   b.reshape(fan_out, 1)]
        in_specs += [pl.BlockSpec((fan_out, fan_in), lambda i: (0, 0)),
                     pl.BlockSpec((fan_out, 1), lambda i: (0, 0))]
    out_dim = params["lin"][-1][0].shape[1]

    # VMEM scratch for every conv output that feeds another conv (never touches HBM).
    scratch_shapes = [pltpu.VMEM((m[2], m[4]), jnp.float32) for m in conv_meta[:-1]]

    out = pl.pallas_call(
        _make_cnn_kernel(tuple(conv_meta), n_lin),
        out_shape=jax.ShapeDtypeStruct((B, out_dim, C_last), jnp.float32),
        grid=(B,),
        in_specs=in_specs,
        out_specs=pl.BlockSpec((None, out_dim, C_last), lambda i: (i, 0, 0)),
        scratch_shapes=scratch_shapes,
        compiler_params=pltpu.CompilerParams(dimension_semantics=("parallel",)),
    )(*inputs)

    # back to torch's (B, C, out_dim) layout, then .squeeze()
    return jnp.squeeze(jnp.transpose(out, (0, 2, 1)))


# ---------------------------------------------------------------------------
# Deterministic parameter init (shapes follow the module's __init__)
# ---------------------------------------------------------------------------
def init_params(key, in_dim, out_dim, ch_sizes, krnl_sizes, strides,
                lin_width, lin_depth):
    conv_params = []
    cin, L = 1, in_dim
    for cout, k, s in zip(ch_sizes, krnl_sizes, strides):
        key, k1, k2 = jax.random.split(key, 3)
        bound = 1.0 / np.sqrt(cin * k)
        w = jax.random.uniform(k1, (cout, cin, k), jnp.float32, -bound, bound)
        b = jax.random.uniform(k2, (cout,), jnp.float32, -bound, bound)
        conv_params.append((w, b))
        cin = cout
        L = (L - k) // s + 1
    # lin_layer_sizes = [first_lin_layer_size] + lin_depth*[lin_width] + [out_dim]
    lin_sizes = [L] + lin_depth * [lin_width] + [out_dim]
    lin_params = []
    for i in range(1, len(lin_sizes)):
        key, k1, k2 = jax.random.split(key, 3)
        fan_in = lin_sizes[i - 1]
        bound = 1.0 / np.sqrt(fan_in)
        # stored as (in, out); identical semantics to torch's x @ W.T + b
        w = jax.random.uniform(k1, (fan_in, lin_sizes[i]), jnp.float32, -bound, bound)
        b = jax.random.uniform(k2, (lin_sizes[i],), jnp.float32, -bound, bound)
        lin_params.append((w, b))
    return {"conv": conv_params, "lin": lin_params}


# ---------------------------------------------------------------------------
# Pure-JAX reference for correctness check
# ---------------------------------------------------------------------------
def ref_forward(x, params, strides):
    h = x[:, None, :]
    for (w, b), s in zip(params["conv"], strides):
        y = jax.lax.conv_general_dilated(
            h, w, window_strides=(s,), padding="VALID",
            dimension_numbers=("NCH", "OIH", "NCH"))
        y = y + b[None, :, None]
        h = jnp.where(y >= 0, y, NEG_SLOPE * y)
    n_lin = len(params["lin"])
    for i, (w, b) in enumerate(params["lin"]):
        h = h @ w + b
        if i < n_lin - 1:
            h = jnp.where(h >= 0, h, NEG_SLOPE * h)
    return jnp.squeeze(h)


if __name__ == "__main__":
    # Small config consistent with the module's constructor arguments
    B, in_dim, out_dim = 2, 16, 1
    ch_sizes = [4, 8]
    krnl_sizes = [3, 3]
    strides = [1, 2]
    lin_width, lin_depth = 32, 2

    key = jax.random.PRNGKey(0)
    key, pkey, xkey = jax.random.split(key, 3)
    params = init_params(pkey, in_dim, out_dim, ch_sizes, krnl_sizes, strides,
                         lin_width, lin_depth)
    x = jax.random.normal(xkey, (B, in_dim), jnp.float32)

    out = cnn_forward(x, params, strides)
    out = jax.block_until_ready(out)

    ref = ref_forward(x, params, strides)
    np.testing.assert_allclose(np.asarray(out), np.asarray(ref),
                               rtol=1e-4, atol=1e-5)
    print("KERNEL_OK")
</pallas_src>

<mosaic_0001>
module attributes {stable_mosaic.version = 11 : i64} {
  func.func @kernel(%arg0: i32, %arg1: memref<1x16x1xf32, #tpu.memory_space<vmem>>, %arg2: memref<3x1x4xf32, #tpu.memory_space<vmem>>, %arg3: memref<1x4xf32, #tpu.memory_space<vmem>>, %arg4: memref<3x4x8xf32, #tpu.memory_space<vmem>>, %arg5: memref<1x8xf32, #tpu.memory_space<vmem>>, %arg6: memref<32x6xf32, #tpu.memory_space<vmem>>, %arg7: memref<32x1xf32, #tpu.memory_space<vmem>>, %arg8: memref<32x32xf32, #tpu.memory_space<vmem>>, %arg9: memref<32x1xf32, #tpu.memory_space<vmem>>, %arg10: memref<1x32xf32, #tpu.memory_space<vmem>>, %arg11: memref<1x1xf32, #tpu.memory_space<vmem>>, %arg12: memref<1x1x8xf32, #tpu.memory_space<vmem>>, %arg13: memref<14x4xf32, #tpu.memory_space<vmem>>) attributes {dimension_semantics = [#tpu.dimension_semantics<parallel>], iteration_bounds = array<i64: 2>, scalar_prefetch = 0 : i64, scratch_operands = 1 : i64, tpu.core_type = #tpu.core_type<tc>, window_params = [{transform_indices = @transform_0, window_bounds = array<i64: 1, 16, 1>}, {pipeline_mode = #tpu.pipeline_mode<synchronous>, transform_indices = @transform_1, window_bounds = array<i64: 3, 1, 4>}, {pipeline_mode = #tpu.pipeline_mode<synchronous>, transform_indices = @transform_2, window_bounds = array<i64: 1, 4>}, {pipeline_mode = #tpu.pipeline_mode<synchronous>, transform_indices = @transform_3, window_bounds = array<i64: 3, 4, 8>}, {pipeline_mode = #tpu.pipeline_mode<synchronous>, transform_indices = @transform_4, window_bounds = array<i64: 1, 8>}, {pipeline_mode = #tpu.pipeline_mode<synchronous>, transform_indices = @transform_5, window_bounds = array<i64: 32, 6>}, {pipeline_mode = #tpu.pipeline_mode<synchronous>, transform_indices = @transform_6, window_bounds = array<i64: 32, 1>}, {pipeline_mode = #tpu.pipeline_mode<synchronous>, transform_indices = @transform_7, window_bounds = array<i64: 32, 32>}, {pipeline_mode = #tpu.pipeline_mode<synchronous>, transform_indices = @transform_8, window_bounds = array<i64: 32, 1>}, {pipeline_mode = #tpu.pipeline_mode<synchronous>, transform_indices = @transform_9, window_bounds = array<i64: 1, 32>}, {pipeline_mode = #tpu.pipeline_mode<synchronous>, transform_indices = @transform_10, window_bounds = array<i64: 1, 1>}, {transform_indices = @transform_11, window_bounds = array<i64: 1, 1, 8>}]} {
    %c0 = arith.constant 0 : index
    %c0_0 = arith.constant 0 : index
    %c0_1 = arith.constant 0 : index
    %0 = vector.load %arg1[%c0, %c0_0, %c0_1] : memref<1x16x1xf32, #tpu.memory_space<vmem>>, vector<1x14x1xf32>
    %1 = vector.shape_cast %0 : vector<1x14x1xf32> to vector<14x1xf32>
    %c0_2 = arith.constant 0 : index
    %c0_3 = arith.constant 0 : index
    %c0_4 = arith.constant 0 : index
    %2 = vector.load %arg2[%c0_2, %c0_3, %c0_4] : memref<3x1x4xf32, #tpu.memory_space<vmem>>, vector<1x1x4xf32>
    %3 = vector.shape_cast %2 : vector<1x1x4xf32> to vector<1x4xf32>
    %4 = vector.broadcast %1 : vector<14x1xf32> to vector<14x4xf32>
    %5 = vector.broadcast %3 : vector<1x4xf32> to vector<14x4xf32>
    %6 = arith.mulf %4, %5 : vector<14x4xf32>
    %c0_5 = arith.constant 0 : index
    %c1 = arith.constant 1 : index
    %c0_6 = arith.constant 0 : index
    %7 = vector.load %arg1[%c0_5, %c1, %c0_6] : memref<1x16x1xf32, #tpu.memory_space<vmem>>, vector<1x14x1xf32>
    %8 = vector.shape_cast %7 : vector<1x14x1xf32> to vector<14x1xf32>
    %c1_7 = arith.constant 1 : index
    %c0_8 = arith.constant 0 : index
    %c0_9 = arith.constant 0 : index
    %9 = vector.load %arg2[%c1_7, %c0_8, %c0_9] : memref<3x1x4xf32, #tpu.memory_space<vmem>>, vector<1x1x4xf32>
    %10 = vector.shape_cast %9 : vector<1x1x4xf32> to vector<1x4xf32>
    %11 = vector.broadcast %8 : vector<14x1xf32> to vector<14x4xf32>
    %12 = vector.broadcast %10 : vector<1x4xf32> to vector<14x4xf32>
    %13 = arith.mulf %11, %12 : vector<14x4xf32>
    %14 = arith.addf %6, %13 : vector<14x4xf32>
    %c0_10 = arith.constant 0 : index
    %c2 = arith.constant 2 : index
    %c0_11 = arith.constant 0 : index
    %15 = vector.load %arg1[%c0_10, %c2, %c0_11] : memref<1x16x1xf32, #tpu.memory_space<vmem>>, vector<1x14x1xf32>
    %16 = vector.shape_cast %15 : vector<1x14x1xf32> to vector<14x1xf32>
    %c2_12 = arith.constant 2 : index
    %c0_13 = arith.constant 0 : index
    %c0_14 = arith.constant 0 : index
    %17 = vector.load %arg2[%c2_12, %c0_13, %c0_14] : memref<3x1x4xf32, #tpu.memory_space<vmem>>, vector<1x1x4xf32>
    %18 = vector.shape_cast %17 : vector<1x1x4xf32> to vector<1x4xf32>
    %19 = vector.broadcast %16 : vector<14x1xf32> to vector<14x4xf32>
    %20 = vector.broadcast %18 : vector<1x4xf32> to vector<14x4xf32>
    %21 = arith.mulf %19, %20 : vector<14x4xf32>
    %22 = arith.addf %14, %21 : vector<14x4xf32>
    %c0_15 = arith.constant 0 : index
    %c0_16 = arith.constant 0 : index
    %23 = vector.load %arg3[%c0_15, %c0_16] : memref<1x4xf32, #tpu.memory_space<vmem>>, vector<1x4xf32>
    %24 = vector.broadcast %23 : vector<1x4xf32> to vector<14x4xf32>
    %25 = arith.addf %22, %24 : vector<14x4xf32>
    %cst = arith.constant 0.000000e+00 : f32
    %26 = vector.broadcast %cst : f32 to vector<14x4xf32>
    %27 = arith.cmpf oge, %25, %26 : vector<14x4xf32>
    %cst_17 = arith.constant 0.00999999977 : f32
    %28 = vector.broadcast %cst_17 : f32 to vector<14x4xf32>
    %29 = arith.mulf %28, %25 : vector<14x4xf32>
    %30 = arith.select %27, %25, %29 : vector<14x4xi1>, vector<14x4xf32>
    %c0_18 = arith.constant 0 : index
    %c0_19 = arith.constant 0 : index
    %31 = vector.load %arg13[%c0_18, %c0_19] : memref<14x4xf32, #tpu.memory_space<vmem>>, vector<14x4xf32>
    tpu.vector_store %arg13[%c0_18, %c0_19], %30 {strides = array<i32>} : memref<14x4xf32, #tpu.memory_space<vmem>>, vector<14x4xf32>,
    %c0_20 = arith.constant 0 : index
    %c0_21 = arith.constant 0 : index
    %32 = tpu.strided_load %arg13[%c0_20, %c0_21] {strides = array<i32: 2, 1>} : memref<14x4xf32, #tpu.memory_space<vmem>>, vector<6x4xf32>
    %c0_22 = arith.constant 0 : index
    %c0_23 = arith.constant 0 : index
    %c0_24 = arith.constant 0 : index
    %33 = vector.load %arg4[%c0_22, %c0_23, %c0_24] : memref<3x4x8xf32, #tpu.memory_space<vmem>>, vector<1x4x8xf32>
    %34 = vector.shape_cast %33 : vector<1x4x8xf32> to vector<4x8xf32>
    %cst_25 = arith.constant dense<0.000000e+00> : vector<6x8xf32>
    %35 = tpu.matmul %32, %34, %cst_25 {dimension_numbers = #tpu.dot_dimension_numbers<[1], [0], [0], [1], [0, 0, 1, 1], [], []>} : vector<6x4xf32>, vector<4x8xf32>, vector<6x8xf32> -> vector<6x8xf32>
    %c1_26 = arith.constant 1 : index
    %c0_27 = arith.constant 0 : index
    %36 = tpu.strided_load %arg13[%c1_26, %c0_27] {strides = array<i32: 2, 1>} : memref<14x4xf32, #tpu.memory_space<vmem>>, vector<6x4xf32>
    %c1_28 = arith.constant 1 : index
    %c0_29 = arith.constant 0 : index
    %c0_30 = arith.constant 0 : index
    %37 = vector.load %arg4[%c1_28, %c0_29, %c0_30] : memref<3x4x8xf32, #tpu.memory_space<vmem>>, vector<1x4x8xf32>
    %38 = vector.shape_cast %37 : vector<1x4x8xf32> to vector<4x8xf32>
    %cst_31 = arith.constant dense<0.000000e+00> : vector<6x8xf32>
    %39 = tpu.matmul %36, %38, %cst_31 {dimension_numbers = #tpu.dot_dimension_numbers<[1], [0], [0], [1], [0, 0, 1, 1], [], []>} : vector<6x4xf32>, vector<4x8xf32>, vector<6x8xf32> -> vector<6x8xf32>
    %40 = arith.addf %35, %39 : vector<6x8xf32>
    %c2_32 = arith.constant 2 : index
    %c0_33 = arith.constant 0 : index
    %41 = tpu.strided_load %arg13[%c2_32, %c0_33] {strides = array<i32: 2, 1>} : memref<14x4xf32, #tpu.memory_space<vmem>>, vector<6x4xf32>
    %c2_34 = arith.constant 2 : index
    %c0_35 = arith.constant 0 : index
    %c0_36 = arith.constant 0 : index
    %42 = vector.load %arg4[%c2_34, %c0_35, %c0_36] : memref<3x4x8xf32, #tpu.memory_space<vmem>>, vector<1x4x8xf32>
    %43 = vector.shape_cast %42 : vector<1x4x8xf32> to vector<4x8xf32>
    %cst_37 = arith.constant dense<0.000000e+00> : vector<6x8xf32>
    %44 = tpu.matmul %41, %43, %cst_37 {dimension_numbers = #tpu.dot_dimension_numbers<[1], [0], [0], [1], [0, 0, 1, 1], [], []>} : vector<6x4xf32>, vector<4x8xf32>, vector<6x8xf32> -> vector<6x8xf32>
    %45 = arith.addf %40, %44 : vector<6x8xf32>
    %c0_38 = arith.constant 0 : index
    %c0_39 = arith.constant 0 : index
    %46 = vector.load %arg5[%c0_38, %c0_39] : memref<1x8xf32, #tpu.memory_space<vmem>>, vector<1x8xf32>
    %47 = vector.broadcast %46 : vector<1x8xf32> to vector<6x8xf32>
    %48 = arith.addf %45, %47 : vector<6x8xf32>
    %cst_40 = arith.constant 0.000000e+00 : f32
    %49 = vector.broadcast %cst_40 : f32 to vector<6x8xf32>
    %50 = arith.cmpf oge, %48, %49 : vector<6x8xf32>
    %cst_41 = arith.constant 0.00999999977 : f32
    %51 = vector.broadcast %cst_41 : f32 to vector<6x8xf32>
    %52 = arith.mulf %51, %48 : vector<6x8xf32>
    %53 = arith.select %50, %48, %52 : vector<6x8xi1>, vector<6x8xf32>
    %c0_42 = arith.constant 0 : index
    %c0_43 = arith.constant 0 : index
    %54 = vector.load %arg6[%c0_42, %c0_43] : memref<32x6xf32, #tpu.memory_space<vmem>>, vector<32x6xf32>
    %cst_44 = arith.constant dense<0.000000e+00> : vector<32x8xf32>
    %55 = tpu.matmul %54, %53, %cst_44 {dimension_numbers = #tpu.dot_dimension_numbers<[1], [0], [0], [1], [0, 0, 1, 1], [], []>} : vector<32x6xf32>, vector<6x8xf32>, vector<32x8xf32> -> vector<32x8xf32>
    %c0_45 = arith.constant 0 : index
    %c0_46 = arith.constant 0 : index
    %56 = vector.load %arg7[%c0_45, %c0_46] : memref<32x1xf32, #tpu.memory_space<vmem>>, vector<32x1xf32>
    %57 = vector.broadcast %56 : vector<32x1xf32> to vector<32x8xf32>
    %58 = arith.addf %55, %57 : vector<32x8xf32>
    %cst_47 = arith.constant 0.000000e+00 : f32
    %59 = vector.broadcast %cst_47 : f32 to vector<32x8xf32>
    %60 = arith.cmpf oge, %58, %59 : vector<32x8xf32>
    %cst_48 = arith.constant 0.00999999977 : f32
    %61 = vector.broadcast %cst_48 : f32 to vector<32x8xf32>
    %62 = arith.mulf %61, %58 : vector<32x8xf32>
    %63 = arith.select %60, %58, %62 : vector<32x8xi1>, vector<32x8xf32>
    %c0_49 = arith.constant 0 : index
    %c0_50 = arith.constant 0 : index
    %64 = vector.load %arg8[%c0_49, %c0_50] : memref<32x32xf32, #tpu.memory_space<vmem>>, vector<32x32xf32>
    %cst_51 = arith.constant dense<0.000000e+00> : vector<32x8xf32>
    %65 = tpu.matmul %64, %63, %cst_51 {dimension_numbers = #tpu.dot_dimension_numbers<[1], [0], [0], [1], [0, 0, 1, 1], [], []>} : vector<32x32xf32>, vector<32x8xf32>, vector<32x8xf32> -> vector<32x8xf32>
    %c0_52 = arith.constant 0 : index
    %c0_53 = arith.constant 0 : index
    %66 = vector.load %arg9[%c0_52, %c0_53] : memref<32x1xf32, #tpu.memory_space<vmem>>, vector<32x1xf32>
    %67 = vector.broadcast %66 : vector<32x1xf32> to vector<32x8xf32>
    %68 = arith.addf %65, %67 : vector<32x8xf32>
    %cst_54 = arith.constant 0.000000e+00 : f32
    %69 = vector.broadcast %cst_54 : f32 to vector<32x8xf32>
    %70 = arith.cmpf oge, %68, %69 : vector<32x8xf32>
    %cst_55 = arith.constant 0.00999999977 : f32
    %71 = vector.broadcast %cst_55 : f32 to vector<32x8xf32>
    %72 = arith.mulf %71, %68 : vector<32x8xf32>
    %73 = arith.select %70, %68, %72 : vector<32x8xi1>, vector<32x8xf32>
    %c0_56 = arith.constant 0 : index
    %c0_57 = arith.constant 0 : index
    %74 = vector.load %arg10[%c0_56, %c0_57] : memref<1x32xf32, #tpu.memory_space<vmem>>, vector<1x32xf32>
    %cst_58 = arith.constant dense<0.000000e+00> : vector<1x8xf32>
    %75 = tpu.matmul %74, %73, %cst_58 {dimension_numbers = #tpu.dot_dimension_numbers<[1], [0], [0], [1], [0, 0, 1, 1], [], []>} : vector<1x32xf32>, vector<32x8xf32>, vector<1x8xf32> -> vector<1x8xf32>
    %c0_59 = arith.constant 0 : index
    %c0_60 = arith.constant 0 : index
    %76 = vector.load %arg11[%c0_59, %c0_60] : memref<1x1xf32, #tpu.memory_space<vmem>>, vector<1x1xf32>
    %77 = vector.broadcast %76 : vector<1x1xf32> to vector<1x8xf32>
    %78 = arith.addf %75, %77 : vector<1x8xf32>
    %c0_61 = arith.constant 0 : index
    %c0_62 = arith.constant 0 : index
    %c0_63 = arith.constant 0 : index
    %79 = vector.load %arg12[%c0_61, %c0_62, %c0_63] : memref<1x1x8xf32, #tpu.memory_space<vmem>>, vector<1x1x8xf32>
    %80 = vector.shape_cast %79 : vector<1x1x8xf32> to vector<1x8xf32>
    %81 = vector.shape_cast %78 : vector<1x8xf32> to vector<1x1x8xf32>
    tpu.vector_store %arg12[%c0_61, %c0_62, %c0_63], %81 {strides = array<i32>} : memref<1x1x8xf32, #tpu.memory_space<vmem>>, vector<1x1x8xf32>,
    return
  }
  func.func @transform_0(%arg0: i32) -> (i32, i32, i32) {
    %c0_i32 = arith.constant 0 : i32
    %c0_i32_0 = arith.constant 0 : i32
    %c0_i32_1 = arith.constant 0 : i32
    return %arg0, %c0_i32, %c0_i32_0 : i32, i32, i32
  }
  func.func @transform_1(%arg0: i32) -> (i32, i32, i32) {
    %c0_i32 = arith.constant 0 : i32
    %c0_i32_0 = arith.constant 0 : i32
    %c0_i32_1 = arith.constant 0 : i32
    %c0_i32_2 = arith.constant 0 : i32
    return %c0_i32, %c0_i32_0, %c0_i32_1 : i32, i32, i32
  }
  func.func @transform_2(%arg0: i32) -> (i32, i32) {
    %c0_i32 = arith.constant 0 : i32
    %c0_i32_0 = arith.constant 0 : i32
    %c0_i32_1 = arith.constant 0 : i32
    return %c0_i32, %c0_i32_0 : i32, i32
  }
  func.func @transform_3(%arg0: i32) -> (i32, i32, i32) {
    %c0_i32 = arith.constant 0 : i32
    %c0_i32_0 = arith.constant 0 : i32
    %c0_i32_1 = arith.constant 0 : i32
    %c0_i32_2 = arith.constant 0 : i32
    return %c0_i32, %c0_i32_0, %c0_i32_1 : i32, i32, i32
  }
  func.func @transform_4(%arg0: i32) -> (i32, i32) {
    %c0_i32 = arith.constant 0 : i32
    %c0_i32_0 = arith.constant 0 : i32
    %c0_i32_1 = arith.constant 0 : i32
    return %c0_i32, %c0_i32_0 : i32, i32
  }
  func.func @transform_5(%arg0: i32) -> (i32, i32) {
    %c0_i32 = arith.constant 0 : i32
    %c0_i32_0 = arith.constant 0 : i32
    %c0_i32_1 = arith.constant 0 : i32
    return %c0_i32, %c0_i32_0 : i32, i32
  }
  func.func @transform_6(%arg0: i32) -> (i32, i32) {
    %c0_i32 = arith.constant 0 : i32
    %c0_i32_0 = arith.constant 0 : i32
    %c0_i32_1 = arith.constant 0 : i32
    return %c0_i32, %c0_i32_0 : i32, i32
  }
  func.func @transform_7(%arg0: i32) -> (i32, i32) {
    %c0_i32 = arith.constant 0 : i32
    %c0_i32_0 = arith.constant 0 : i32
    %c0_i32_1 = arith.constant 0 : i32
    return %c0_i32, %c0_i32_0 : i32, i32
  }
  func.func @transform_8(%arg0: i32) -> (i32, i32) {
    %c0_i32 = arith.constant 0 : i32
    %c0_i32_0 = arith.constant 0 : i32
    %c0_i32_1 = arith.constant 0 : i32
    return %c0_i32, %c0_i32_0 : i32, i32
  }
  func.func @transform_9(%arg0: i32) -> (i32, i32) {
    %c0_i32 = arith.constant 0 : i32
    %c0_i32_0 = arith.constant 0 : i32
    %c0_i32_1 = arith.constant 0 : i32
    return %c0_i32, %c0_i32_0 : i32, i32
  }
  func.func @transform_10(%arg0: i32) -> (i32, i32) {
    %c0_i32 = arith.constant 0 : i32
    %c0_i32_0 = arith.constant 0 : i32
    %c0_i32_1 = arith.constant 0 : i32
    return %c0_i32, %c0_i32_0 : i32, i32
  }
  func.func @transform_11(%arg0: i32) -> (i32, i32, i32) {
    %c0_i32 = arith.constant 0 : i32
    %c0_i32_0 = arith.constant 0 : i32
    %c0_i32_1 = arith.constant 0 : i32
    return %arg0, %c0_i32, %c0_i32_0 : i32, i32, i32
  }
}

</mosaic_0001>

<llo_original>
// kernel: tpu_custom_call.1
$region0: #{tpu_custom_call.1}
  #allocation0 [shape = 'u32[]', space=smem, size = 0x4, offset = 0x4, fixed_abs, tag = 'smem constant byte address 0x4 - core index']
  #allocation1 [shape = 'u32[144,128]{1,0:T(1,128)}', space=vmem, size = 0x12000, scoped, tag = 'internal scratch']
  #allocation2 [shape = 'f32[14,4]{1,0:T(8,128)}', space=vmem, size = 0x2000, scoped, tag = 'scratch operand']
  #allocation3 [shape = 'f32[1,1]{1,0:T(1,128)S(1)}', space=vmem, size = 0x200, scoped, tag = 'scoped memory for tpu_custom_call.1']
  %s0 = inlined_call_operand.vmem [shape: f32[2,16,1], index: 0, kind: input, shape index: {}]
  %s1 = inlined_call_operand.vmem [shape: f32[3,1,4], index: 1, kind: input, shape index: {}]
  %s2 = inlined_call_operand.vmem [shape: f32[1,4], index: 2, kind: input, shape index: {}]
  %s3 = inlined_call_operand.vmem [shape: f32[3,4,8], index: 3, kind: input, shape index: {}]
  %s4 = inlined_call_operand.vmem [shape: f32[1,8], index: 4, kind: input, shape index: {}]
  %s5 = inlined_call_operand.vmem [shape: f32[32,6], index: 5, kind: input, shape index: {}]
  %s6 = inlined_call_operand.vmem [shape: f32[32,1], index: 6, kind: input, shape index: {}]
  %s7 = inlined_call_operand.vmem [shape: f32[32,32], index: 7, kind: input, shape index: {}]
  %s8 = inlined_call_operand.vmem [shape: f32[32,1], index: 8, kind: input, shape index: {}]
  %s9 = inlined_call_operand.vmem [shape: f32[1,32], index: 9, kind: input, shape index: {}]
  %s10 = inlined_call_operand.<no memory space> [shape: f32[1,1], index: 10, kind: input, shape index: {}]
  %s11 = inlined_call_operand.hbm [shape: f32[2,1,8], index: 11, kind: output, shape index: {}]
  %s12 = sld [smem:[#allocation0]]
  $region77: #{tpu_custom_call.1} parent=0
    _
  %s14 = ssub.s32 1, %s12
  %s15 = scalar_select 0, %s14, %s12
  %v16 = vstv %s10
  %17 = vst [vmem:[#allocation3] sm:$0x1] %v16
  $region1: #{tpu_custom_call.1} parent=0
    #allocation4 [shape = 'u8[1024]{0}', space=vmem, size = 0x400, scoped, tag = 'output window, operand 0']
    #allocation5 [shape = 's32[2]{0}', space=sflag, size = 0x8, scoped, tag = 'scoped memory for tpu_custom_call.1']
    %18 = vsyncpa [#allocation5], 0
    %s19 = scalar_lea.sflag [#allocation5], 1
    %20 = vsyncpa %s19, 0
    loop: start=0, step=1, limit=4
    $region2: #{tpu_custom_call.1} parent=1 // loop_pre_header
      _
    $region3: #{tpu_custom_call.1} parent=1 // loop_header
      %s22 = sphi 0, %s26
      %p23 = scmp.ge.s32.totalorder %s22, 4
      %s32 = sphi 0, %s34
      %s35 = sphi 0, %s32
      %s36 = sphi 0, %s35
      %s52 = sphi 0, %s36
      %s56 = sphi 0, %s56
      %s58 = sphi 0, %s56
      %s59 = sphi 0, %s58
      %s73 = sphi 0, %s59
      %s77 = sphi 0, %s77
      %s79 = sphi 0, %s77
      %s80 = sphi 0, %s79
      %s94 = sphi 0, %s80
      %s98 = sphi 0, %s98
      %s100 = sphi 0, %s98
      %s101 = sphi 0, %s100
      %s115 = sphi 0, %s101
      %s119 = sphi 0, %s119
      %s121 = sphi 0, %s119
      %s122 = sphi 0, %s121
      %s136 = sphi 0, %s122
      %s140 = sphi 0, %s140
      %s142 = sphi 0, %s140
      %s143 = sphi 0, %s142
      %s157 = sphi 0, %s143
      %s161 = sphi 0, %s161
      %s163 = sphi 0, %s161
      %s164 = sphi 0, %s163
      %s178 = sphi 0, %s164
      %s182 = sphi 0, %s182
      %s184 = sphi 0, %s182
      %s185 = sphi 0, %s184
      %s199 = sphi 0, %s185
      %s203 = sphi 0, %s203
      %s205 = sphi 0, %s203
      %s206 = sphi 0, %s205
      %s220 = sphi 0, %s206
      %s224 = sphi 0, %s224
      %s226 = sphi 0, %s224
      %s227 = sphi 0, %s226
      %s241 = sphi 0, %s227
      %s245 = sphi 0, %s245
      %s247 = sphi 0, %s245
      %s248 = sphi 0, %s247
      %s262 = sphi 0, %s248
      %s268 = sphi 0, %s270
      %s271 = sphi 0, %s268
      %s272 = sphi 0, %s271
      %s288 = sphi 0, %s272
    $region4: #{tpu_custom_call.1} parent=1 // loop_header_branch
      %25 = sbr.rel (%p23) target = $region8
    $region5: #{tpu_custom_call.1} parent=1 // loop_body
      %s27 = ssub.s32 %s22, 1
      %s28 = ssub.s32 %s22, 2
      %s29 = sadd.s32 %s22, 1
      %s30 = ssub.s32 %s22, %s29
      %p31 = scmp.eq.s32.totalorder %s30, 0
      %s33 = sadd.s32 %s32, 1
      %s34 = scalar_select %p31, %s32, %s33
      %p37 = pneg %p31
      %p38 = scmp.eq.s32.totalorder %s22, 1
      %p39 = por %p37, %p38
      %p40 = scmp.ne.s32.totalorder %s32, %s35
      %p41 = scmp.eq.s32.totalorder %s22, 0
      %p42 = por %p40, %p41
      %p43 = scmp.ne.s32.totalorder %s32, %s35
      %p44 = scmp.eq.s32.totalorder %s27, 1
      %p45 = por %p43, %p44
      %p46 = scmp.ne.s32.totalorder %s35, %s36
      %p47 = scmp.eq.s32.totalorder %s27, 0
      %p48 = por %p46, %p47
      %p49 = scmp.ne.s32.totalorder %s35, %s36
      %p50 = scmp.eq.s32.totalorder %s28, 1
      %p51 = por %p49, %p50
      %p53 = scmp.ne.s32.totalorder %s36, %s52
      %p54 = scmp.eq.s32.totalorder %s28, 0
      %p55 = por %p53, %p54
      %s57 = sadd.s32 %s56, 1
      %p60 = scmp.eq.s32.totalorder %s22, 1
      %p61 = scmp.ne.s32.totalorder %s56, %s58
      %p62 = scmp.eq.s32.totalorder %s22, 0
      %p63 = por %p61, %p62
      %p64 = scmp.ne.s32.totalorder %s56, %s58
      %p65 = scmp.eq.s32.totalorder %s27, 1
      %p66 = por %p64, %p65
      %p67 = scmp.ne.s32.totalorder %s58, %s59
      %p68 = scmp.eq.s32.totalorder %s27, 0
      %p69 = por %p67, %p68
      %p70 = scmp.ne.s32.totalorder %s58, %s59
      %p71 = scmp.eq.s32.totalorder %s28, 1
      %p72 = por %p70, %p71
      %p74 = scmp.ne.s32.totalorder %s59, %s73
      %p75 = scmp.eq.s32.totalorder %s28, 0
      %p76 = por %p74, %p75
      %s78 = sadd.s32 %s77, 1
      %p81 = scmp.eq.s32.totalorder %s22, 1
      %p82 = scmp.ne.s32.totalorder %s77, %s79
      %p83 = scmp.eq.s32.totalorder %s22, 0
      %p84 = por %p82, %p83
      %p85 = scmp.ne.s32.totalorder %s77, %s79
      %p86 = scmp.eq.s32.totalorder %s27, 1
      %p87 = por %p85, %p86
      %p88 = scmp.ne.s32.totalorder %s79, %s80
      %p89 = scmp.eq.s32.totalorder %s27, 0
      %p90 = por %p88, %p89
      %p91 = scmp.ne.s32.totalorder %s79, %s80
      %p92 = scmp.eq.s32.totalorder %s28, 1
      %p93 = por %p91, %p92
      %p95 = scmp.ne.s32.totalorder %s80, %s94
      %p96 = scmp.eq.s32.totalorder %s28, 0
      %p97 = por %p95, %p96
      %s99 = sadd.s32 %s98, 1
      %p102 = scmp.eq.s32.totalorder %s22, 1
      %p103 = scmp.ne.s32.totalorder %s98, %s100
      %p104 = scmp.eq.s32.totalorder %s22, 0
      %p105 = por %p103, %p104
      %p106 = scmp.ne.s32.totalorder %s98, %s100
      %p107 = scmp.eq.s32.totalorder %s27, 1
      %p108 = por %p106, %p107
      %p109 = scmp.ne.s32.totalorder %s100, %s101
      %p110 = scmp.eq.s32.totalorder %s27, 0
      %p111 = por %p109, %p110
      %p112 = scmp.ne.s32.totalorder %s100, %s101
      %p113 = scmp.eq.s32.totalorder %s28, 1
      %p114 = por %p112, %p113
      %p116 = scmp.ne.s32.totalorder %s101, %s115
      %p117 = scmp.eq.s32.totalorder %s28, 0
      %p118 = por %p116, %p117
      %s120 = sadd.s32 %s119, 1
      %p123 = scmp.eq.s32.totalorder %s22, 1
      %p124 = scmp.ne.s32.totalorder %s119, %s121
      %p125 = scmp.eq.s32.totalorder %s22, 0
      %p126 = por %p124, %p125
      %p127 = scmp.ne.s32.totalorder %s119, %s121
      %p128 = scmp.eq.s32.totalorder %s27, 1
      %p129 = por %p127, %p128
      %p130 = scmp.ne.s32.totalorder %s121, %s122
      %p131 = scmp.eq.s32.totalorder %s27, 0
      %p132 = por %p130, %p131
      %p133 = scmp.ne.s32.totalorder %s121, %s122
      %p134 = scmp.eq.s32.totalorder %s28, 1
      %p135 = por %p133, %p134
      %p137 = scmp.ne.s32.totalorder %s122, %s136
      %p138 = scmp.eq.s32.totalorder %s28, 0
      %p139 = por %p137, %p138
      %s141 = sadd.s32 %s140, 1
      %p144 = scmp.eq.s32.totalorder %s22, 1
      %p145 = scmp.ne.s32.totalorder %s140, %s142
      %p146 = scmp.eq.s32.totalorder %s22, 0
      %p147 = por %p145, %p146
      %p148 = scmp.ne.s32.totalorder %s140, %s142
      %p149 = scmp.eq.s32.totalorder %s27, 1
      %p150 = por %p148, %p149
      %p151 = scmp.ne.s32.totalorder %s142, %s143
      %p152 = scmp.eq.s32.totalorder %s27, 0
      %p153 = por %p151, %p152
      %p154 = scmp.ne.s32.totalorder %s142, %s143
      %p155 = scmp.eq.s32.totalorder %s28, 1
      %p156 = por %p154, %p155
      %p158 = scmp.ne.s32.totalorder %s143, %s157
      %p159 = scmp.eq.s32.totalorder %s28, 0
      %p160 = por %p158, %p159
      %s162 = sadd.s32 %s161, 1
      %p165 = scmp.eq.s32.totalorder %s22, 1
      %p166 = scmp.ne.s32.totalorder %s161, %s163
      %p167 = scmp.eq.s32.totalorder %s22, 0
      %p168 = por %p166, %p167
      %p169 = scmp.ne.s32.totalorder %s161, %s163
      %p170 = scmp.eq.s32.totalorder %s27, 1
      %p171 = por %p169, %p170
      %p172 = scmp.ne.s32.totalorder %s163, %s164
      %p173 = scmp.eq.s32.totalorder %s27, 0
      %p174 = por %p172, %p173
      %p175 = scmp.ne.s32.totalorder %s163, %s164
      %p176 = scmp.eq.s32.totalorder %s28, 1
      %p177 = por %p175, %p176
      %p179 = scmp.ne.s32.totalorder %s164, %s178
      %p180 = scmp.eq.s32.totalorder %s28, 0
      %p181 = por %p179, %p180
      %s183 = sadd.s32 %s182, 1
      %p186 = scmp.eq.s32.totalorder %s22, 1
      %p187 = scmp.ne.s32.totalorder %s182, %s184
      %p188 = scmp.eq.s32.totalorder %s22, 0
      %p189 = por %p187, %p188
      %p190 = scmp.ne.s32.totalorder %s182, %s184
      %p191 = scmp.eq.s32.totalorder %s27, 1
      %p192 = por %p190, %p191
      %p193 = scmp.ne.s32.totalorder %s184, %s185
      %p194 = scmp.eq.s32.totalorder %s27, 0
      %p195 = por %p193, %p194
      %p196 = scmp.ne.s32.totalorder %s184, %s185
      %p197 = scmp.eq.s32.totalorder %s28, 1
      %p198 = por %p196, %p197
      %p200 = scmp.ne.s32.totalorder %s185, %s199
      %p201 = scmp.eq.s32.totalorder %s28, 0
      %p202 = por %p200, %p201
      %s204 = sadd.s32 %s203, 1
      %p207 = scmp.eq.s32.totalorder %s22, 1
      %p208 = scmp.ne.s32.totalorder %s203, %s205
      %p209 = scmp.eq.s32.totalorder %s22, 0
      %p210 = por %p208, %p209
      %p211 = scmp.ne.s32.totalorder %s203, %s205
      %p212 = scmp.eq.s32.totalorder %s27, 1
      %p213 = por %p211, %p212
      %p214 = scmp.ne.s32.totalorder %s205, %s206
      %p215 = scmp.eq.s32.totalorder %s27, 0
      %p216 = por %p214, %p215
      %p217 = scmp.ne.s32.totalorder %s205, %s206
      %p218 = scmp.eq.s32.totalorder %s28, 1
      %p219 = por %p217, %p218
      %p221 = scmp.ne.s32.totalorder %s206, %s220
      %p222 = scmp.eq.s32.totalorder %s28, 0
      %p223 = por %p221, %p222
      %s225 = sadd.s32 %s224, 1
      %p228 = scmp.eq.s32.totalorder %s22, 1
      %p229 = scmp.ne.s32.totalorder %s224, %s226
      %p230 = scmp.eq.s32.totalorder %s22, 0
      %p231 = por %p229, %p230
      %p232 = scmp.ne.s32.totalorder %s224, %s226
      %p233 = scmp.eq.s32.totalorder %s27, 1
      %p234 = por %p232, %p233
      %p235 = scmp.ne.s32.totalorder %s226, %s227
      %p236 = scmp.eq.s32.totalorder %s27, 0
      %p237 = por %p235, %p236
      %p238 = scmp.ne.s32.totalorder %s226, %s227
      %p239 = scmp.eq.s32.totalorder %s28, 1
      %p240 = por %p238, %p239
      %p242 = scmp.ne.s32.totalorder %s227, %s241
      %p243 = scmp.eq.s32.totalorder %s28, 0
      %p244 = por %p242, %p243
      %s246 = sadd.s32 %s245, 1
      %p249 = scmp.eq.s32.totalorder %s22, 1
      %p250 = scmp.ne.s32.totalorder %s245, %s247
      %p251 = scmp.eq.s32.totalorder %s22, 0
      %p252 = por %p250, %p251
      %p253 = scmp.ne.s32.totalorder %s245, %s247
      %p254 = scmp.eq.s32.totalorder %s27, 1
      %p255 = por %p253, %p254
      %p256 = scmp.ne.s32.totalorder %s247, %s248
      %p257 = scmp.eq.s32.totalorder %s27, 0
      %p258 = por %p256, %p257
      %p259 = scmp.ne.s32.totalorder %s247, %s248
      %p260 = scmp.eq.s32.totalorder %s28, 1
      %p261 = por %p259, %p260
      %p263 = scmp.ne.s32.totalorder %s248, %s262
      %p264 = scmp.eq.s32.totalorder %s28, 0
      %p265 = por %p263, %p264
      %s266 = ssub.s32 %s22, %s29
      %p267 = scmp.eq.s32.totalorder %s266, 0
      %s269 = sadd.s32 %s268, 1
      %s270 = scalar_select %p267, %s268, %s269
      %p273 = pneg %p267
      %p274 = scmp.eq.s32.totalorder %s22, 1
      %p275 = por %p273, %p274
      %p276 = scmp.ne.s32.totalorder %s268, %s271
      %p277 = scmp.eq.s32.totalorder %s22, 0
      %p278 = por %p276, %p277
      %p279 = scmp.ne.s32.totalorder %s268, %s271
      %p280 = scmp.eq.s32.totalorder %s27, 1
      %p281 = por %p279, %p280
      %p282 = scmp.ne.s32.totalorder %s271, %s272
      %p283 = scmp.eq.s32.totalorder %s27, 0
      %p284 = por %p282, %p283
      %p285 = scmp.ne.s32.totalorder %s271, %s272
      %p286 = scmp.eq.s32.totalorder %s28, 1
      %p287 = por %p285, %p286
      %p289 = scmp.ne.s32.totalorder %s272, %s288
      %p290 = scmp.eq.s32.totalorder %s28, 0
      %p291 = por %p289, %p290
      %p292 = scmp.le.s32.totalorder 1, %s22
      %p293 = scmp.lt.s32.totalorder %s22, 3
      %p294 = pnand %p292, %p293
      %p295 = pneg %p294
      // Predicated region
      $region9: #{tpu_custom_call.1} parent=5 // pred_check
        _
      $region10: #{tpu_custom_call.1} parent=5 // pred_check_branch
        %297 = sbr.rel (%p294) target = $region12
      $region11: #{tpu_custom_call.1} parent=5 // pred_region
        %s298 = ssub.s32 %s22, 1
        // Predicated region
        $region13: #{tpu_custom_call.1} parent=11 // pred_check
          %p299 = pneg %p69
        $region14: #{tpu_custom_call.1} parent=11 // pred_check_branch
          %301 = sbr.rel (%p299) target = $region16
        $region15: #{tpu_custom_call.1} parent=11 // pred_region
          _
        $region16: #{tpu_custom_call.1} parent=11 // pred_fallthru
          _
        // Predicated region
        $region17: #{tpu_custom_call.1} parent=11 // pred_check
          %p302 = pneg %p90
        $region18: #{tpu_custom_call.1} parent=11 // pred_check_branch
          %304 = sbr.rel (%p302) target = $region20
        $region19: #{tpu_custom_call.1} parent=11 // pred_region
          _
        $region20: #{tpu_custom_call.1} parent=11 // pred_fallthru
          _
        // Predicated region
        $region21: #{tpu_custom_call.1} parent=11 // pred_check
          %p305 = pneg %p111
        $region22: #{tpu_custom_call.1} parent=11 // pred_check_branch
          %307 = sbr.rel (%p305) target = $region24
        $region23: #{tpu_custom_call.1} parent=11 // pred_region
          _
        $region24: #{tpu_custom_call.1} parent=11 // pred_fallthru
          _
        // Predicated region
        $region25: #{tpu_custom_call.1} parent=11 // pred_check
          %p308 = pneg %p132
        $region26: #{tpu_custom_call.1} parent=11 // pred_check_branch
          %310 = sbr.rel (%p308) target = $region28
        $region27: #{tpu_custom_call.1} parent=11 // pred_region
          _
        $region28: #{tpu_custom_call.1} parent=11 // pred_fallthru
          _
        // Predicated region
        $region29: #{tpu_custom_call.1} parent=11 // pred_check
          %p311 = pneg %p153
        $region30: #{tpu_custom_call.1} parent=11 // pred_check_branch
          %313 = sbr.rel (%p311) target = $region32
        $region31: #{tpu_custom_call.1} parent=11 // pred_region
          _
        $region32: #{tpu_custom_call.1} parent=11 // pred_fallthru
          _
        // Predicated region
        $region33: #{tpu_custom_call.1} parent=11 // pred_check
          %p314 = pneg %p174
        $region34: #{tpu_custom_call.1} parent=11 // pred_check_branch
          %316 = sbr.rel (%p314) target = $region36
        $region35: #{tpu_custom_call.1} parent=11 // pred_region
          _
        $region36: #{tpu_custom_call.1} parent=11 // pred_fallthru
          _
        // Predicated region
        $region37: #{tpu_custom_call.1} parent=11 // pred_check
          %p317 = pneg %p195
        $region38: #{tpu_custom_call.1} parent=11 // pred_check_branch
          %319 = sbr.rel (%p317) target = $region40
        $region39: #{tpu_custom_call.1} parent=11 // pred_region
          _
        $region40: #{tpu_custom_call.1} parent=11 // pred_fallthru
          _
        // Predicated region
        $region41: #{tpu_custom_call.1} parent=11 // pred_check
          %p320 = pneg %p216
        $region42: #{tpu_custom_call.1} parent=11 // pred_check_branch
          %322 = sbr.rel (%p320) target = $region44
        $region43: #{tpu_custom_call.1} parent=11 // pred_region
          _
        $region44: #{tpu_custom_call.1} parent=11 // pred_fallthru
          _
        // Predicated region
        $region45: #{tpu_custom_call.1} parent=11 // pred_check
          %p323 = pneg %p237
        $region46: #{tpu_custom_call.1} parent=11 // pred_check_branch
          %325 = sbr.rel (%p323) target = $region48
        $region47: #{tpu_custom_call.1} parent=11 // pred_region
          _
        $region48: #{tpu_custom_call.1} parent=11 // pred_fallthru
          _
        // Predicated region
        $region49: #{tpu_custom_call.1} parent=11 // pred_check
          %p326 = pneg %p258
        $region50: #{tpu_custom_call.1} parent=11 // pred_check_branch
          %328 = sbr.rel (%p326) target = $region52
        $region51: #{tpu_custom_call.1} parent=11 // pred_region
          _
        $region52: #{tpu_custom_call.1} parent=11 // pred_fallthru
          _
      $region12: #{tpu_custom_call.1} parent=5 // pred_fallthru
        _
      %p329 = scmp.lt.s32.totalorder %s22, 2
      // Predicated region
      $region53: #{tpu_custom_call.1} parent=5 // pred_check
        %p330 = pneg %p329
      $region54: #{tpu_custom_call.1} parent=5 // pred_check_branch
        %332 = sbr.rel (%p330) target = $region56
      $region55: #{tpu_custom_call.1} parent=5 // pred_region
        // Predicated region
        $region57: #{tpu_custom_call.1} parent=55 // pred_check
          %p333 = pneg %p42
        $region58: #{tpu_custom_call.1} parent=55 // pred_check_branch
          %335 = sbr.rel (%p333) target = $region60
        $region59: #{tpu_custom_call.1} parent=55 // pred_region
          %p336 = scmp.lt.s32.totalorder %s22, 1
          %s337 = scalar_select %p336, %s22, 1
          %s338 = smul.addr %s337, 2
          %s339 = smul.addr %s338, 8
          %s340 = scalar_lea.vmem %s0, %s339
        $region60: #{tpu_custom_call.1} parent=55 // pred_fallthru
          _
      $region56: #{tpu_custom_call.1} parent=5 // pred_fallthru
        _
      %p341 = scmp.le.s32.totalorder 1, %s22
      %p342 = scmp.lt.s32.totalorder %s22, 3
      %p343 = pnand %p341, %p342
      %p344 = pneg %p343
      // Predicated region
      $region61: #{tpu_custom_call.1} parent=5 // pred_check
        _
      $region62: #{tpu_custom_call.1} parent=5 // pred_check_branch
        %346 = sbr.rel (%p343) target = $region64
      $region63: #{tpu_custom_call.1} parent=5 // pred_region
        %s347 = ssub.s32 %s22, 1
        %p348 = scmp.lt.s32.totalorder %s27, 1
        %s349 = scalar_select %p348, %s27, 1
        %s350 = smul.addr %s349, 2
        %s351 = smul.addr %s350, 8
        %s352 = scalar_lea.vmem %s0, %s351
        %p353 = pneg %p48
        %p354 = pneg %p45
        %p355 = pneg %p69
        %p356 = pneg %p66
        %p357 = pneg %p90
        %p358 = pneg %p87
        %p359 = pneg %p111
        %p360 = pneg %p108
        %p361 = pneg %p132
        %p362 = pneg %p129
        %p363 = pneg %p153
        %p364 = pneg %p150
        %p365 = pneg %p174
        %p366 = pneg %p171
        %p367 = pneg %p195
        %p368 = pneg %p192
        %p369 = pneg %p216
        %p370 = pneg %p213
        %p371 = pneg %p237
        %p372 = pneg %p234
        %p373 = pneg %p258
        %p374 = pneg %p255
        %p375 = pneg %p284
        %p376 = pneg %p281
        %s377 = sand.u32 %s271, 1
        %s378 = scalar_lea.sflag [#allocation5], %s377
        %s379 = sand.u32 %s271, 1
        %s380 = scalar_lea.vmem [#allocation4], %s379
        %p381 = scmp.lt.s32.totalorder %s27, 1
        %s382 = scalar_select %p381, %s27, 1
        %s383 = smul.addr %s382, 2
        %s384 = smul.addr %s383, 8
        %s385 = scalar_lea.vmem %s0, %s384
        %v386 = vld [vmem:[%s385] sm:$0xff]
        %v387 = vld [vmem:[%s385 + $0x8] sm:$0x3f]
        %v388 = vld [vmem:[%s1] sm:$0x1]
        %390 = vset.pattern.permute.xlu0 0
        %391 = vperm.xlu0 %390, %v386
        %v392 = vpop.permute.xlu0 %391
        %395 = vset.pattern.permute.xlu0 0
        %396 = vperm.xlu0 %395, %v387
        %v397 = vpop.permute.xlu0 %396
        %v400 = vlaneseq
        %v401 = vshrl.u32 %v400, 7
        %v402 = vsub.s32 0, %v401
        %v403 = vrot.slane %v388, %v402
        %v405 = vmul.f32 %v392, %v403
        %v406 = vmul.f32 %v397, %v403
        %v407 = vld [vmem:[%s385 + $0x1] sm:$0xff]
        %v408 = vld [vmem:[%s385 + $0x9] sm:$0x3f]
        %s409 = scalar_lea.vmem %s1, 1
        %v410 = vld [vmem:[%s409] sm:$0x1]
        %412 = vset.pattern.permute.xlu0 0
        %413 = vperm.xlu0 %412, %v407
        %v414 = vpop.permute.xlu0 %413
        %417 = vset.pattern.permute.xlu0 0
        %418 = vperm.xlu0 %417, %v408
        %v419 = vpop.permute.xlu0 %418
        %v422 = vlaneseq
        %v423 = vshrl.u32 %v422, 7
        %v424 = vsub.s32 0, %v423
        %v425 = vrot.slane %v410, %v424
        %v427 = vmul.f32 %v414, %v425
        %v428 = vmul.f32 %v419, %v425
        %v429 = vadd.f32 %v405, %v427
        %v430 = vadd.f32 %v406, %v428
        %v431 = vld [vmem:[%s385 + $0x2] sm:$0xff]
        %v432 = vld [vmem:[%s385 + $0xa] sm:$0x3f]
        %s433 = scalar_lea.vmem %s1, 2
        %v434 = vld [vmem:[%s433] sm:$0x1]
        %436 = vset.pattern.permute.xlu0 0
        %437 = vperm.xlu0 %436, %v431
        %v438 = vpop.permute.xlu0 %437
        %441 = vset.pattern.permute.xlu0 0
        %442 = vperm.xlu0 %441, %v432
        %v443 = vpop.permute.xlu0 %442
        %v446 = vlaneseq
        %v447 = vshrl.u32 %v446, 7
        %v448 = vsub.s32 0, %v447
        %v449 = vrot.slane %v434, %v448
        %v451 = vmul.f32 %v438, %v449
        %v452 = vmul.f32 %v443, %v449
        %v453 = vadd.f32 %v429, %v451
        %v454 = vadd.f32 %v430, %v452
        %v455 = vld [vmem:[%s2] sm:$0x1]
        %v457 = vlaneseq
        %v458 = vshrl.u32 %v457, 7
        %v459 = vsub.s32 0, %v458
        %v460 = vrot.slane %v455, %v459
        %v462 = vadd.f32 %v453, %v460
        %v463 = vadd.f32 %v454, %v460
        %vm464 = vcmp.ge.f32.partialorder %v462, 0.0
        %vm465 = vcmp.ge.f32.partialorder %v463, 0.0
        %v466 = vmul.f32 %v462, 0.01
        %v467 = vmul.f32 %v463, 0.01
        %v468 = vsel %vm464, %v462, %v466
        %v469 = vsel %vm465, %v463, %v467
        %vm470 = vcmask 31744
        %471 = vst.msk [vmem:[#allocation2] sm:$0xff] %vm470, %v468
        %vm472 = vcmask 29696
        %473 = vst.msk [vmem:[#allocation2 + $0x8] sm:$0x3f] %vm472, %v469
        %v474 = vld [vmem:[#allocation2] ss:$2 sm:$0x3f]
        %v475 = vld [vmem:[%s3] sm:$0xf]
        %s476 = scalar_lea.vmem [#allocation2], 1
        %v477 = vld [vmem:[%s476] ss:$2 sm:$0x3f]
        %s478 = scalar_lea.vmem %s3, 4
        %v479 = vld [vmem:[%s478] sm:$0xf]
        %v481 = vsel %vm470, %v477, 0
        %vm483 = vcmask 1043456
        %v485 = vsel %vm483, %v479, 0
        %487 = vmatprep.subr.mxu0 0.0
        %488 = vmatpush1.msra.mxu0 %v485
        %489 = vmatprep.subr.mxu0 0.0
        %490 = vmatpush1.msra.mxu0 0.0
        %491 = vmatprep.subr.mxu0 0.0
        %492 = vmatpush1.msra.mxu0 0.0
        %493 = vmatprep.subr.mxu0 0.0
        %494 = vmatpush1.msra.mxu0 0.0
        %495 = vmatprep.subr.mxu0 0.0
        %496 = vmatpush1.msra.mxu0 0.0
        %497 = vmatprep.subr.mxu0 0.0
        %498 = vmatpush1.msra.mxu0 0.0
        %499 = vmatprep.subr.mxu0 0.0
        %500 = vmatpush1.msra.mxu0 0.0
        %501 = vmatprep.subr.mxu0 0.0
        %502 = vmatpush1.msra.mxu0 0.0
        %503 = vmatprep.subr.mxu0 0.0
        %504 = vmatpush1.msra.mxu0 0.0
        %505 = vmatprep.subr.mxu0 0.0
        %506 = vmatpush1.msra.mxu0 0.0
        %507 = vmatprep.subr.mxu0 0.0
        %508 = vmatpush1.msra.mxu0 0.0
        %509 = vmatprep.subr.mxu0 0.0
        %510 = vmatpush1.msra.mxu0 0.0
        %511 = vmatprep.subr.mxu0 0.0
        %512 = vmatpush1.msra.mxu0 0.0
        %513 = vmatprep.subr.mxu0 0.0
        %514 = vmatpush1.msra.mxu0 0.0
        %515 = vmatprep.subr.mxu0 0.0
        %516 = vmatpush1.msra.mxu0 0.0
        %517 = vmatprep.subr.mxu0 0.0
        %518 = vmatpush1.msra.mxu0 0.0
        %519 = vmatprep.subr.mxu0 0.0
        %520 = vmatpush1.msra.mxu0 0.0
        %521 = vmatprep.subr.mxu0 0.0
        %522 = vmatpush1.msra.mxu0 0.0
        %523 = vmatprep.subr.mxu0 0.0
        %524 = vmatpush1.msra.mxu0 0.0
        %525 = vmatprep.subr.mxu0 0.0
        %526 = vmatpush1.msra.mxu0 0.0
        %527 = vmatprep.subr.mxu0 0.0
        %528 = vmatpush1.msra.mxu0 0.0
        %529 = vmatprep.subr.mxu0 0.0
        %530 = vmatpush1.msra.mxu0 0.0
        %531 = vmatprep.subr.mxu0 0.0
        %532 = vmatpush1.msra.mxu0 0.0
        %533 = vmatprep.subr.mxu0 0.0
        %534 = vmatpush1.msra.mxu0 0.0
        %535 = vmatprep.subr.mxu0 0.0
        %536 = vmatpush1.msra.mxu0 0.0
        %537 = vmatprep.subr.mxu0 0.0
        %538 = vmatpush1.msra.mxu0 0.0
        %539 = vmatprep.subr.mxu0 0.0
        %540 = vmatpush1.msra.mxu0 0.0
        %541 = vmatprep.subr.mxu0 0.0
        %542 = vmatpush1.msra.mxu0 0.0
        %543 = vmatprep.subr.mxu0 0.0
        %544 = vmatpush1.msra.mxu0 0.0
        %545 = vmatprep.subr.mxu0 0.0
        %546 = vmatpush1.msra.mxu0 0.0
        %547 = vmatprep.subr.mxu0 0.0
        %548 = vmatpush1.msra.mxu0 0.0
        %549 = vmatprep.subr.mxu0 0.0
        %550 = vmatpush1.msra.mxu0 0.0
        %551 = vmatprep.mubr.f32.mxu0 0.0
        %552 = vmatmul.mubr.f32.gmra.mrb[0].mxu0 %v481
        %v553 = vpop.f32.mrb[0].mxu0
        %v554 = vadd.f32 0.0, %v553
        %v555 = vpop.f32.mrb[0].mxu0
        %556 = vdwg.mxu0
        %v558 = vsel %vm470, %v474, 0
        %v561 = vsel %vm483, %v475, 0
        %563 = vmatprep.subr.mxu0 0.0
        %564 = vmatpush1.msra.mxu0 %v561
        %565 = vmatprep.subr.mxu0 0.0
        %566 = vmatpush1.msra.mxu0 0.0
        %567 = vmatprep.subr.mxu0 0.0
        %568 = vmatpush1.msra.mxu0 0.0
        %569 = vmatprep.subr.mxu0 0.0
        %570 = vmatpush1.msra.mxu0 0.0
        %571 = vmatprep.subr.mxu0 0.0
        %572 = vmatpush1.msra.mxu0 0.0
        %573 = vmatprep.subr.mxu0 0.0
        %574 = vmatpush1.msra.mxu0 0.0
        %575 = vmatprep.subr.mxu0 0.0
        %576 = vmatpush1.msra.mxu0 0.0
        %577 = vmatprep.subr.mxu0 0.0
        %578 = vmatpush1.msra.mxu0 0.0
        %579 = vmatprep.subr.mxu0 0.0
        %580 = vmatpush1.msra.mxu0 0.0
        %581 = vmatprep.subr.mxu0 0.0
        %582 = vmatpush1.msra.mxu0 0.0
        %583 = vmatprep.subr.mxu0 0.0
        %584 = vmatpush1.msra.mxu0 0.0
        %585 = vmatprep.subr.mxu0 0.0
        %586 = vmatpush1.msra.mxu0 0.0
        %587 = vmatprep.subr.mxu0 0.0
        %588 = vmatpush1.msra.mxu0 0.0
        %589 = vmatprep.subr.mxu0 0.0
        %590 = vmatpush1.msra.mxu0 0.0
        %591 = vmatprep.subr.mxu0 0.0
        %592 = vmatpush1.msra.mxu0 0.0
        %593 = vmatprep.subr.mxu0 0.0
        %594 = vmatpush1.msra.mxu0 0.0
        %595 = vmatprep.subr.mxu0 0.0
        %596 = vmatpush1.msra.mxu0 0.0
        %597 = vmatprep.subr.mxu0 0.0
        %598 = vmatpush1.msra.mxu0 0.0
        %599 = vmatprep.subr.mxu0 0.0
        %600 = vmatpush1.msra.mxu0 0.0
        %601 = vmatprep.subr.mxu0 0.0
        %602 = vmatpush1.msra.mxu0 0.0
        %603 = vmatprep.subr.mxu0 0.0
        %604 = vmatpush1.msra.mxu0 0.0
        %605 = vmatprep.subr.mxu0 0.0
        %606 = vmatpush1.msra.mxu0 0.0
        %607 = vmatprep.subr.mxu0 0.0
        %608 = vmatpush1.msra.mxu0 0.0
        %609 = vmatprep.subr.mxu0 0.0
        %610 = vmatpush1.msra.mxu0 0.0
        %611 = vmatprep.subr.mxu0 0.0
        %612 = vmatpush1.msra.mxu0 0.0
        %613 = vmatprep.subr.mxu0 0.0
        %614 = vmatpush1.msra.mxu0 0.0
        %615 = vmatprep.subr.mxu0 0.0
        %616 = vmatpush1.msra.mxu0 0.0
        %617 = vmatprep.subr.mxu0 0.0
        %618 = vmatpush1.msra.mxu0 0.0
        %619 = vmatprep.subr.mxu0 0.0
        %620 = vmatpush1.msra.mxu0 0.0
        %621 = vmatprep.subr.mxu0 0.0
        %622 = vmatpush1.msra.mxu0 0.0
        %623 = vmatprep.subr.mxu0 0.0
        %624 = vmatpush1.msra.mxu0 0.0
        %625 = vmatprep.subr.mxu0 0.0
        %626 = vmatpush1.msra.mxu0 0.0
        %627 = vmatprep.mubr.f32.mxu0 0.0
        %628 = vmatmul.mubr.f32.gmra.mrb[0].mxu0 %v558
        %v629 = vpop.f32.mrb[0].mxu0
        %v630 = vadd.f32 %v554, %v629
        %v631 = vpop.f32.mrb[0].mxu0
        %632 = vdwg.mxu0
        %s633 = scalar_lea.vmem [#allocation2], 2
        %v634 = vld [vmem:[%s633] ss:$2 sm:$0x3f]
        %s635 = scalar_lea.vmem %s3, 8
        %v636 = vld [vmem:[%s635] sm:$0xf]
        %v638 = vsel %vm470, %v634, 0
        %v641 = vsel %vm483, %v636, 0
        %643 = vmatprep.subr.mxu0 0.0
        %644 = vmatpush1.msra.mxu0 %v641
        %645 = vmatprep.subr.mxu0 0.0
        %646 = vmatpush1.msra.mxu0 0.0
        %647 = vmatprep.subr.mxu0 0.0
        %648 = vmatpush1.msra.mxu0 0.0
        %649 = vmatprep.subr.mxu0 0.0
        %650 = vmatpush1.msra.mxu0 0.0
        %651 = vmatprep.subr.mxu0 0.0
        %652 = vmatpush1.msra.mxu0 0.0
        %653 = vmatprep.subr.mxu0 0.0
        %654 = vmatpush1.msra.mxu0 0.0
        %655 = vmatprep.subr.mxu0 0.0
        %656 = vmatpush1.msra.mxu0 0.0
        %657 = vmatprep.subr.mxu0 0.0
        %658 = vmatpush1.msra.mxu0 0.0
        %659 = vmatprep.subr.mxu0 0.0
        %660 = vmatpush1.msra.mxu0 0.0
        %661 = vmatprep.subr.mxu0 0.0
        %662 = vmatpush1.msra.mxu0 0.0
        %663 = vmatprep.subr.mxu0 0.0
        %664 = vmatpush1.msra.mxu0 0.0
        %665 = vmatprep.subr.mxu0 0.0
        %666 = vmatpush1.msra.mxu0 0.0
        %667 = vmatprep.subr.mxu0 0.0
        %668 = vmatpush1.msra.mxu0 0.0
        %669 = vmatprep.subr.mxu0 0.0
        %670 = vmatpush1.msra.mxu0 0.0
        %671 = vmatprep.subr.mxu0 0.0
        %672 = vmatpush1.msra.mxu0 0.0
        %673 = vmatprep.subr.mxu0 0.0
        %674 = vmatpush1.msra.mxu0 0.0
        %675 = vmatprep.subr.mxu0 0.0
        %676 = vmatpush1.msra.mxu0 0.0
        %677 = vmatprep.subr.mxu0 0.0
        %678 = vmatpush1.msra.mxu0 0.0
        %679 = vmatprep.subr.mxu0 0.0
        %680 = vmatpush1.msra.mxu0 0.0
        %681 = vmatprep.subr.mxu0 0.0
        %682 = vmatpush1.msra.mxu0 0.0
        %683 = vmatprep.subr.mxu0 0.0
        %684 = vmatpush1.msra.mxu0 0.0
        %685 = vmatprep.subr.mxu0 0.0
        %686 = vmatpush1.msra.mxu0 0.0
        %687 = vmatprep.subr.mxu0 0.0
        %688 = vmatpush1.msra.mxu0 0.0
        %689 = vmatprep.subr.mxu0 0.0
        %690 = vmatpush1.msra.mxu0 0.0
        %691 = vmatprep.subr.mxu0 0.0
        %692 = vmatpush1.msra.mxu0 0.0
        %693 = vmatprep.subr.mxu0 0.0
        %694 = vmatpush1.msra.mxu0 0.0
        %695 = vmatprep.subr.mxu0 0.0
        %696 = vmatpush1.msra.mxu0 0.0
        %697 = vmatprep.subr.mxu0 0.0
        %698 = vmatpush1.msra.mxu0 0.0
        %699 = vmatprep.subr.mxu0 0.0
        %700 = vmatpush1.msra.mxu0 0.0
        %701 = vmatprep.subr.mxu0 0.0
        %702 = vmatpush1.msra.mxu0 0.0
        %703 = vmatprep.subr.mxu0 0.0
        %704 = vmatpush1.msra.mxu0 0.0
        %705 = vmatprep.subr.mxu0 0.0
        %706 = vmatpush1.msra.mxu0 0.0
        %707 = vmatprep.mubr.f32.mxu0 0.0
        %708 = vmatmul.mubr.f32.gmra.mrb[0].mxu0 %v638
        %v709 = vpop.f32.mrb[0].mxu0
        %v710 = vadd.f32 0.0, %v709
        %v711 = vpop.f32.mrb[0].mxu0
        %712 = vdwg.mxu0
        %v713 = vadd.f32 %v630, %v710
        %v714 = vld [vmem:[%s4] sm:$0x1]
        %v716 = vlaneseq
        %v717 = vshrl.u32 %v716, 7
        %v718 = vsub.s32 0, %v717
        %v719 = vrot.slane %v714, %v718
        %v721 = vadd.f32 %v713, %v719
        %vm722 = vcmp.ge.f32.partialorder %v721, 0.0
        %v723 = vmul.f32 %v721, 0.01
        %v724 = vsel %vm722, %v721, %v723
        %v725 = vld [vmem:[%s5] sm:$0xff]
        %v726 = vld [vmem:[%s5 + $0x8] sm:$0xff]
        %v727 = vld [vmem:[%s5 + $0x10] sm:$0xff]
        %v728 = vld [vmem:[%s5 + $0x18] sm:$0xff]
        %v729 = vld [vmem:[%s6] sm:$0xff]
        %v730 = vld [vmem:[%s6 + $0x8] sm:$0xff]
        %v731 = vld [vmem:[%s6 + $0x10] sm:$0xff]
        %v732 = vld [vmem:[%s6 + $0x18] sm:$0xff]
        %734 = vset.pattern.permute.xlu0 0
        %735 = vperm.xlu0 %734, %v729
        %v736 = vpop.permute.xlu0 %735
        %739 = vset.pattern.permute.xlu0 0
        %740 = vperm.xlu0 %739, %v730
        %v741 = vpop.permute.xlu0 %740
        %744 = vset.pattern.permute.xlu0 0
        %745 = vperm.xlu0 %744, %v731
        %v746 = vpop.permute.xlu0 %745
        %749 = vset.pattern.permute.xlu0 0
        %750 = vperm.xlu0 %749, %v732
        %v751 = vpop.permute.xlu0 %750
        %vm753 = vcmask 48128
        %v755 = vsel %vm753, %v725, 0
        %v758 = vsel %vm753, %v726, 0
        %v761 = vsel %vm753, %v727, 0
        %v764 = vsel %vm753, %v728, 0
        %vm766 = vcmask 1045504
        %v768 = vsel %vm766, %v724, 0
        %770 = vmatprep.subr.mxu0 0.0
        %771 = vmatpush1.msra.mxu0 %v768
        %772 = vmatprep.subr.mxu0 0.0
        %773 = vmatpush1.msra.mxu0 0.0
        %774 = vmatprep.subr.mxu0 0.0
        %775 = vmatpush1.msra.mxu0 0.0
        %776 = vmatprep.subr.mxu0 0.0
        %777 = vmatpush1.msra.mxu0 0.0
        %778 = vmatprep.subr.mxu0 0.0
        %779 = vmatpush1.msra.mxu0 0.0
        %780 = vmatprep.subr.mxu0 0.0
        %781 = vmatpush1.msra.mxu0 0.0
        %782 = vmatprep.subr.mxu0 0.0
        %783 = vmatpush1.msra.mxu0 0.0
        %784 = vmatprep.subr.mxu0 0.0
        %785 = vmatpush1.msra.mxu0 0.0
        %786 = vmatprep.subr.mxu0 0.0
        %787 = vmatpush1.msra.mxu0 0.0
        %788 = vmatprep.subr.mxu0 0.0
        %789 = vmatpush1.msra.mxu0 0.0
        %790 = vmatprep.subr.mxu0 0.0
        %791 = vmatpush1.msra.mxu0 0.0
        %792 = vmatprep.subr.mxu0 0.0
        %793 = vmatpush1.msra.mxu0 0.0
        %794 = vmatprep.subr.mxu0 0.0
        %795 = vmatpush1.msra.mxu0 0.0
        %796 = vmatprep.subr.mxu0 0.0
        %797 = vmatpush1.msra.mxu0 0.0
        %798 = vmatprep.subr.mxu0 0.0
        %799 = vmatpush1.msra.mxu0 0.0
        %800 = vmatprep.subr.mxu0 0.0
        %801 = vmatpush1.msra.mxu0 0.0
        %802 = vmatprep.subr.mxu0 0.0
        %803 = vmatpush1.msra.mxu0 0.0
        %804 = vmatprep.subr.mxu0 0.0
        %805 = vmatpush1.msra.mxu0 0.0
        %806 = vmatprep.subr.mxu0 0.0
        %807 = vmatpush1.msra.mxu0 0.0
        %808 = vmatprep.subr.mxu0 0.0
        %809 = vmatpush1.msra.mxu0 0.0
        %810 = vmatprep.subr.mxu0 0.0
        %811 = vmatpush1.msra.mxu0 0.0
        %812 = vmatprep.subr.mxu0 0.0
        %813 = vmatpush1.msra.mxu0 0.0
        %814 = vmatprep.subr.mxu0 0.0
        %815 = vmatpush1.msra.mxu0 0.0
        %816 = vmatprep.subr.mxu0 0.0
        %817 = vmatpush1.msra.mxu0 0.0
        %818 = vmatprep.subr.mxu0 0.0
        %819 = vmatpush1.msra.mxu0 0.0
        %820 = vmatprep.subr.mxu0 0.0
        %821 = vmatpush1.msra.mxu0 0.0
        %822 = vmatprep.subr.mxu0 0.0
        %823 = vmatpush1.msra.mxu0 0.0
        %824 = vmatprep.subr.mxu0 0.0
        %825 = vmatpush1.msra.mxu0 0.0
        %826 = vmatprep.subr.mxu0 0.0
        %827 = vmatpush1.msra.mxu0 0.0
        %828 = vmatprep.subr.mxu0 0.0
        %829 = vmatpush1.msra.mxu0 0.0
        %830 = vmatprep.subr.mxu0 0.0
        %831 = vmatpush1.msra.mxu0 0.0
        %832 = vmatprep.subr.mxu0 0.0
        %833 = vmatpush1.msra.mxu0 0.0
        %834 = vmatprep.mubr.f32.mxu0 0.0
        %835 = vmatmul.mubr.f32.gmra.mrb[0].mxu0 %v755
        %v836 = vpop.f32.mrb[0].mxu0
        %v837 = vadd.f32 %v736, %v836
        %v838 = vpop.f32.mrb[0].mxu0
        %839 = vmatprep.mubr.f32.mxu0 0.0
        %840 = vmatmul.mubr.f32.gmra.mrb[0].mxu0 %v758
        %v841 = vpop.f32.mrb[0].mxu0
        %v842 = vadd.f32 %v741, %v841
        %v843 = vpop.f32.mrb[0].mxu0
        %844 = vmatprep.mubr.f32.mxu0 0.0
        %845 = vmatmul.mubr.f32.gmra.mrb[0].mxu0 %v761
        %v846 = vpop.f32.mrb[0].mxu0
        %v847 = vadd.f32 %v746, %v846
        %v848 = vpop.f32.mrb[0].mxu0
        %849 = vmatprep.mubr.f32.mxu0 0.0
        %850 = vmatmul.mubr.f32.gmra.mrb[0].mxu0 %v764
        %v851 = vpop.f32.mrb[0].mxu0
        %v852 = vadd.f32 %v751, %v851
        %v853 = vpop.f32.mrb[0].mxu0
        %854 = vdwg.mxu0
        %vm855 = vcmp.ge.f32.partialorder %v837, 0.0
        %vm856 = vcmp.ge.f32.partialorder %v842, 0.0
        %vm857 = vcmp.ge.f32.partialorder %v847, 0.0
        %vm858 = vcmp.ge.f32.partialorder %v852, 0.0
        %v859 = vmul.f32 %v837, 0.01
        %v860 = vmul.f32 %v842, 0.01
        %v861 = vmul.f32 %v847, 0.01
        %v862 = vmul.f32 %v852, 0.01
        %v863 = vsel %vm855, %v837, %v859
        %v864 = vsel %vm856, %v842, %v860
        %v865 = vsel %vm857, %v847, %v861
        %v866 = vsel %vm858, %v852, %v862
        %v867 = vld [vmem:[%s7] sm:$0xff]
        %v868 = vld [vmem:[%s7 + $0x8] sm:$0xff]
        %v869 = vld [vmem:[%s7 + $0x10] sm:$0xff]
        %v870 = vld [vmem:[%s7 + $0x18] sm:$0xff]
        %v871 = vld [vmem:[%s8] sm:$0xff]
        %v872 = vld [vmem:[%s8 + $0x8] sm:$0xff]
        %v873 = vld [vmem:[%s8 + $0x10] sm:$0xff]
        %v874 = vld [vmem:[%s8 + $0x18] sm:$0xff]
        %876 = vset.pattern.permute.xlu0 0
        %877 = vperm.xlu0 %876, %v871
        %v878 = vpop.permute.xlu0 %877
        %881 = vset.pattern.permute.xlu0 0
        %882 = vperm.xlu0 %881, %v872
        %v883 = vpop.permute.xlu0 %882
        %886 = vset.pattern.permute.xlu0 0
        %887 = vperm.xlu0 %886, %v873
        %v888 = vpop.permute.xlu0 %887
        %891 = vset.pattern.permute.xlu0 0
        %892 = vperm.xlu0 %891, %v874
        %v893 = vpop.permute.xlu0 %892
        %vm895 = vcmask 261120
        %v897 = vsel %vm895, %v867, 0
        %v900 = vsel %vm895, %v868, 0
        %v903 = vsel %vm895, %v869, 0
        %v906 = vsel %vm895, %v870, 0
        %908 = vmatprep.subr.mxu0 0.0
        %909 = vmatpush1.msra.mxu0 %v863
        %910 = vmatprep.subr.mxu0 0.0
        %911 = vmatpush1.msra.mxu0 %v864
        %912 = vmatprep.subr.mxu0 0.0
        %913 = vmatpush1.msra.mxu0 %v865
        %914 = vmatprep.subr.mxu0 0.0
        %915 = vmatpush1.msra.mxu0 %v866
        %916 = vmatprep.subr.mxu0 0.0
        %917 = vmatpush1.msra.mxu0 0.0
        %918 = vmatprep.subr.mxu0 0.0
        %919 = vmatpush1.msra.mxu0 0.0
        %920 = vmatprep.subr.mxu0 0.0
        %921 = vmatpush1.msra.mxu0 0.0
        %922 = vmatprep.subr.mxu0 0.0
        %923 = vmatpush1.msra.mxu0 0.0
        %924 = vmatprep.subr.mxu0 0.0
        %925 = vmatpush1.msra.mxu0 0.0
        %926 = vmatprep.subr.mxu0 0.0
        %927 = vmatpush1.msra.mxu0 0.0
        %928 = vmatprep.subr.mxu0 0.0
        %929 = vmatpush1.msra.mxu0 0.0
        %930 = vmatprep.subr.mxu0 0.0
        %931 = vmatpush1.msra.mxu0 0.0
        %932 = vmatprep.subr.mxu0 0.0
        %933 = vmatpush1.msra.mxu0 0.0
        %934 = vmatprep.subr.mxu0 0.0
        %935 = vmatpush1.msra.mxu0 0.0
        %936 = vmatprep.subr.mxu0 0.0
        %937 = vmatpush1.msra.mxu0 0.0
        %938 = vmatprep.subr.mxu0 0.0
        %939 = vmatpush1.msra.mxu0 0.0
        %940 = vmatprep.subr.mxu0 0.0
        %941 = vmatpush1.msra.mxu0 0.0
        %942 = vmatprep.subr.mxu0 0.0
        %943 = vmatpush1.msra.mxu0 0.0
        %944 = vmatprep.subr.mxu0 0.0
        %945 = vmatpush1.msra.mxu0 0.0
        %946 = vmatprep.subr.mxu0 0.0
        %947 = vmatpush1.msra.mxu0 0.0
        %948 = vmatprep.subr.mxu0 0.0
        %949 = vmatpush1.msra.mxu0 0.0
        %950 = vmatprep.subr.mxu0 0.0
        %951 = vmatpush1.msra.mxu0 0.0
        %952 = vmatprep.subr.mxu0 0.0
        %953 = vmatpush1.msra.mxu0 0.0
        %954 = vmatprep.subr.mxu0 0.0
        %955 = vmatpush1.msra.mxu0 0.0
        %956 = vmatprep.subr.mxu0 0.0
        %957 = vmatpush1.msra.mxu0 0.0
        %958 = vmatprep.subr.mxu0 0.0
        %959 = vmatpush1.msra.mxu0 0.0
        %960 = vmatprep.subr.mxu0 0.0
        %961 = vmatpush1.msra.mxu0 0.0
        %962 = vmatprep.subr.mxu0 0.0
        %963 = vmatpush1.msra.mxu0 0.0
        %964 = vmatprep.subr.mxu0 0.0
        %965 = vmatpush1.msra.mxu0 0.0
        %966 = vmatprep.subr.mxu0 0.0
        %967 = vmatpush1.msra.mxu0 0.0
        %968 = vmatprep.subr.mxu0 0.0
        %969 = vmatpush1.msra.mxu0 0.0
        %970 = vmatprep.subr.mxu0 0.0
        %971 = vmatpush1.msra.mxu0 0.0
        %972 = vmatprep.mubr.f32.mxu0 0.0
        %973 = vmatmul.mubr.f32.gmra.mrb[0].mxu0 %v897
        %v974 = vpop.f32.mrb[0].mxu0
        %v975 = vadd.f32 %v878, %v974
        %v976 = vpop.f32.mrb[0].mxu0
        %977 = vmatprep.mubr.f32.mxu0 0.0
        %978 = vmatmul.mubr.f32.gmra.mrb[0].mxu0 %v900
        %v979 = vpop.f32.mrb[0].mxu0
        %v980 = vadd.f32 %v883, %v979
        %v981 = vpop.f32.mrb[0].mxu0
        %982 = vmatprep.mubr.f32.mxu0 0.0
        %983 = vmatmul.mubr.f32.gmra.mrb[0].mxu0 %v903
        %v984 = vpop.f32.mrb[0].mxu0
        %v985 = vadd.f32 %v888, %v984
        %v986 = vpop.f32.mrb[0].mxu0
        %987 = vmatprep.mubr.f32.mxu0 0.0
        %988 = vmatmul.mubr.f32.gmra.mrb[0].mxu0 %v906
        %v989 = vpop.f32.mrb[0].mxu0
        %v990 = vadd.f32 %v893, %v989
        %v991 = vpop.f32.mrb[0].mxu0
        %992 = vdwg.mxu0
        %vm993 = vcmp.ge.f32.partialorder %v975, 0.0
        %vm994 = vcmp.ge.f32.partialorder %v980, 0.0
        %vm995 = vcmp.ge.f32.partialorder %v985, 0.0
        %vm996 = vcmp.ge.f32.partialorder %v990, 0.0
        %v997 = vmul.f32 %v975, 0.01
        %v998 = vmul.f32 %v980, 0.01
        %v999 = vmul.f32 %v985, 0.01
        %v1000 = vmul.f32 %v990, 0.01
        %v1001 = vsel %vm993, %v975, %v997
        %v1002 = vsel %vm994, %v980, %v998
        %v1003 = vsel %vm995, %v985, %v999
        %v1004 = vsel %vm996, %v990, %v1000
        %v1005 = vld [vmem:[%s9] sm:$0x1]
        %v1006 = vld [vmem:[#allocation3] sm:$0x1]
        %1008 = vset.pattern.permute.xlu0 0
        %1009 = vperm.xlu0 %1008, %v1006
        %v1010 = vpop.permute.xlu0 %1009
        %v1012 = vlaneseq
        %v1013 = vshrl.u32 %v1012, 7
        %v1014 = vsub.s32 0, %v1013
        %v1015 = vrot.slane %v1010, %v1014
        %v1017 = vsel %vm895, %v1005, 0
        %1019 = vmatprep.subr.mxu0 0.0
        %1020 = vmatpush1.msra.mxu0 %v1001
        %1021 = vmatprep.subr.mxu0 0.0
        %1022 = vmatpush1.msra.mxu0 %v1002
        %1023 = vmatprep.subr.mxu0 0.0
        %1024 = vmatpush1.msra.mxu0 %v1003
        %1025 = vmatprep.subr.mxu0 0.0
        %1026 = vmatpush1.msra.mxu0 %v1004
        %1027 = vmatprep.subr.mxu0 0.0
        %1028 = vmatpush1.msra.mxu0 0.0
        %1029 = vmatprep.subr.mxu0 0.0
        %1030 = vmatpush1.msra.mxu0 0.0
        %1031 = vmatprep.subr.mxu0 0.0
        %1032 = vmatpush1.msra.mxu0 0.0
        %1033 = vmatprep.subr.mxu0 0.0
        %1034 = vmatpush1.msra.mxu0 0.0
        %1035 = vmatprep.subr.mxu0 0.0
        %1036 = vmatpush1.msra.mxu0 0.0
        %1037 = vmatprep.subr.mxu0 0.0
        %1038 = vmatpush1.msra.mxu0 0.0
        %1039 = vmatprep.subr.mxu0 0.0
        %1040 = vmatpush1.msra.mxu0 0.0
        %1041 = vmatprep.subr.mxu0 0.0
        %1042 = vmatpush1.msra.mxu0 0.0
        %1043 = vmatprep.subr.mxu0 0.0
        %1044 = vmatpush1.msra.mxu0 0.0
        %1045 = vmatprep.subr.mxu0 0.0
        %1046 = vmatpush1.msra.mxu0 0.0
        %1047 = vmatprep.subr.mxu0 0.0
        %1048 = vmatpush1.msra.mxu0 0.0
        %1049 = vmatprep.subr.mxu0 0.0
        %1050 = vmatpush1.msra.mxu0 0.0
        %1051 = vmatprep.subr.mxu0 0.0
        %1052 = vmatpush1.msra.mxu0 0.0
        %1053 = vmatprep.subr.mxu0 0.0
        %1054 = vmatpush1.msra.mxu0 0.0
        %1055 = vmatprep.subr.mxu0 0.0
        %1056 = vmatpush1.msra.mxu0 0.0
        %1057 = vmatprep.subr.mxu0 0.0
        %1058 = vmatpush1.msra.mxu0 0.0
        %1059 = vmatprep.subr.mxu0 0.0
        %1060 = vmatpush1.msra.mxu0 0.0
        %1061 = vmatprep.subr.mxu0 0.0
        %1062 = vmatpush1.msra.mxu0 0.0
        %1063 = vmatprep.subr.mxu0 0.0
        %1064 = vmatpush1.msra.mxu0 0.0
        %1065 = vmatprep.subr.mxu0 0.0
        %1066 = vmatpush1.msra.mxu0 0.0
        %1067 = vmatprep.subr.mxu0 0.0
        %1068 = vmatpush1.msra.mxu0 0.0
        %1069 = vmatprep.subr.mxu0 0.0
        %1070 = vmatpush1.msra.mxu0 0.0
        %1071 = vmatprep.subr.mxu0 0.0
        %1072 = vmatpush1.msra.mxu0 0.0
        %1073 = vmatprep.subr.mxu0 0.0
        %1074 = vmatpush1.msra.mxu0 0.0
        %1075 = vmatprep.subr.mxu0 0.0
        %1076 = vmatpush1.msra.mxu0 0.0
        %1077 = vmatprep.subr.mxu0 0.0
        %1078 = vmatpush1.msra.mxu0 0.0
        %1079 = vmatprep.subr.mxu0 0.0
        %1080 = vmatpush1.msra.mxu0 0.0
        %1081 = vmatprep.subr.mxu0 0.0
        %1082 = vmatpush1.msra.mxu0 0.0
        %1083 = vmatprep.mubr.f32.mxu0 0.0
        %1084 = vmatmul.mubr.f32.gmra.mrb[0].mxu0 %v1017
        %v1085 = vpop.f32.mrb[0].mxu0
        %v1086 = vadd.f32 %v1015, %v1085
        %v1087 = vpop.f32.mrb[0].mxu0
        %1088 = vdwg.mxu0
        %vm1089 = vcmask 57344
        %1090 = vst.msk [vmem:[%s380] sm:$0x1] %vm1089, %v1086
        %s1091 = sand.u32 %s271, 1
        %s1092 = scalar_lea.sflag [#allocation5], %s1091
        %s1093 = sand.u32 %s271, 1
        %s1094 = scalar_lea.vmem [#allocation4], %s1093
        // Predicated region
        $region65: #{tpu_custom_call.1} parent=63 // pred_check
          %p1095 = pneg %p281
        $region66: #{tpu_custom_call.1} parent=63 // pred_check_branch
          %1097 = sbr.rel (%p1095) target = $region68
        $region67: #{tpu_custom_call.1} parent=63 // pred_region
          %s1099 = ssub.s32 16, 16
          %1100 = vsyncadd %s1092, %s1099
          %s1101 = smul.addr %s27, 16
          %s1102 = scalar_lea.hbm %s11, %s1101
          %s1104 = sshll.u32 %s1094, 4
          %s1105 = int_to_ptr.vmem [resolvable:$true] %s1104
          %1107 = dma.vmem_to_hbm [thread:$0]  %s1105, 16, %s1102, %s1092
        $region68: #{tpu_custom_call.1} parent=63 // pred_fallthru
          _
      $region64: #{tpu_custom_call.1} parent=5 // pred_fallthru
        _
      %p1108 = scmp.le.s32.totalorder 2, %s22
      // Predicated region
      $region69: #{tpu_custom_call.1} parent=5 // pred_check
        %p1109 = pneg %p1108
      $region70: #{tpu_custom_call.1} parent=5 // pred_check_branch
        %1111 = sbr.rel (%p1109) target = $region72
      $region71: #{tpu_custom_call.1} parent=5 // pred_region
        %s1112 = ssub.s32 %s22, 2
        // Predicated region
        $region73: #{tpu_custom_call.1} parent=71 // pred_check
          %p1113 = pneg %p287
        $region74: #{tpu_custom_call.1} parent=71 // pred_check_branch
          %1115 = sbr.rel (%p1113) target = $region76
        $region75: #{tpu_custom_call.1} parent=71 // pred_region
          %s1116 = sand.u32 %s272, 1
          %s1117 = scalar_lea.sflag [#allocation5], %s1116
          %s1118 = sand.u32 %s272, 1
          %s1119 = scalar_lea.vmem [#allocation4], %s1118
          %1120 = dma.done %s1117, 16
        $region76: #{tpu_custom_call.1} parent=71 // pred_fallthru
          _
      $region72: #{tpu_custom_call.1} parent=5 // pred_fallthru
        _
    $region6: #{tpu_custom_call.1} parent=1 // loop_footer
      %s26 = sadd.s32 1, %s22
    $region7: #{tpu_custom_call.1} parent=1 // loop_footer_branch
      %21 = sbr.rel target = $region3
    $region8: #{tpu_custom_call.1} parent=1 // loop_exit
      _
    %1121 = vsyncpa [#allocation5], 1
    %s1122 = scalar_lea.sflag [#allocation5], 1
    %1123 = vsyncpa %s1122, 1

</llo_original>
